<compile_context>
chip_gen: v5e
topology: v5e:2x2
jax: 0.10.0
libtpu: 0.0.40
codegen_flags: <defaults>
</compile_context>

<pallas_src>
import functools

import jax
import jax.numpy as jnp
from jax.experimental import pallas as pl
from jax.experimental.pallas import tpu as pltpu

LANE = 128
SUBLANE = 8


def _pad_up(n, m):
    return ((n + m - 1) // m) * m


def _make_kernel(inv_n):
    """inv_n = 1 / true_batch_size (padded batch rows are exactly zero)."""

    def kernel(x_ref, w1_ref, gamma_ref, beta_ref, w2_ref, b2_ref,
               out2_ref, hidden_ref):
        # --- fc1 (bias omitted: it cancels in train-mode BatchNorm) ---
        h = jnp.dot(x_ref[...], w1_ref[...], preferred_element_type=jnp.float32)

        # --- bn1 (training-mode batch statistics, eps=1e-5) ---
        # Single reduction pass: mean = E[h], var = E[h^2] - mean^2 (biased).
        # Padded batch rows of h are exactly 0 (zero x rows, no bias), so they
        # contribute nothing to the sums; only inv_n carries the true batch size.
        s1 = jnp.sum(h, axis=0, keepdims=True)        # (1, h_p)
        s2 = jnp.sum(h * h, axis=0, keepdims=True)    # (1, h_p)
        mean = s1 * inv_n
        var = jnp.maximum(s2 * inv_n - mean * mean, 0.0)
        scale = jax.lax.rsqrt(var + 1e-5) * gamma_ref[...]

        # --- ReLU ---
        hidden = jnp.maximum((h - mean) * scale + beta_ref[...], 0.0)
        hidden_ref[...] = hidden

        # --- fc2 + Sigmoid (reciprocal on the EUP slot, approx vrcp) ---
        o1 = jnp.dot(hidden, w2_ref[...],
                     preferred_element_type=jnp.float32) + b2_ref[...]
        out2_ref[...] = pl.reciprocal(1.0 + jnp.exp(-o1), approx=True)

    return kernel


@jax.jit
def fcnet_forward(x, params):
    """x: (B, input_dim) float32. Returns (output2, output) like the torch module."""
    w1, b1, gamma, beta, w2, b2 = params
    del b1  # cancels exactly in train-mode BatchNorm (see kernel comment)

    B, input_dim = x.shape
    hidden_1 = w1.shape[1]
    op_dim = w2.shape[1]

    # Pad batch to sublane multiple and feature dims to lane multiples.
    b_p = _pad_up(B, SUBLANE)
    in_p = _pad_up(input_dim, LANE)
    h_p = _pad_up(hidden_1, LANE)
    o_p = _pad_up(op_dim, LANE)

    xp = jnp.zeros((b_p, in_p), jnp.float32).at[:B, :input_dim].set(x)
    w1p = jnp.zeros((in_p, h_p), jnp.float32).at[:input_dim, :hidden_1].set(w1)
    gp = jnp.zeros((1, h_p), jnp.float32).at[:, :hidden_1].set(gamma)
    bp = jnp.zeros((1, h_p), jnp.float32).at[:, :hidden_1].set(beta)
    w2p = jnp.zeros((h_p, o_p), jnp.float32).at[:hidden_1, :op_dim].set(w2)
    b2p = jnp.zeros((1, o_p), jnp.float32).at[:, :op_dim].set(b2)

    out_shapes = (
        jax.ShapeDtypeStruct((b_p, o_p), jnp.float32),   # output2 (sigmoid), padded
        jax.ShapeDtypeStruct((b_p, h_p), jnp.float32),   # output (relu(bn(fc1))), padded
    )

    vmem_spec = pl.BlockSpec(memory_space=pltpu.VMEM)

    out2_p, hidden_p = pl.pallas_call(
        _make_kernel(1.0 / float(B)),
        out_shape=out_shapes,
        in_specs=[vmem_spec] * 6,
        out_specs=(vmem_spec, vmem_spec),
    )(xp, w1p, gp, bp, w2p, b2p)

    # Slice padding back off.
    return out2_p[:B, :op_dim], hidden_p[:B, :hidden_1]


def init_params(key, input_dim=21, hidden_1=200, hidden_2=200, op_dim=17):
    """Deterministic init mimicking torch.nn.Linear default (U(-1/sqrt(fan_in), ..))."""
    k1, k2, k3, k4 = jax.random.split(key, 4)
    lim1 = 1.0 / jnp.sqrt(jnp.float32(input_dim))
    lim2 = 1.0 / jnp.sqrt(jnp.float32(hidden_2))
    # Store weights already transposed: (in_features, out_features).
    w1 = jax.random.uniform(k1, (input_dim, hidden_1), jnp.float32, -lim1, lim1)
    b1 = jax.random.uniform(k2, (1, hidden_1), jnp.float32, -lim1, lim1)
    w2 = jax.random.uniform(k3, (hidden_2, op_dim), jnp.float32, -lim2, lim2)
    b2 = jax.random.uniform(k4, (1, op_dim), jnp.float32, -lim2, lim2)
    gamma = jnp.ones((1, hidden_1), jnp.float32)   # bn1.weight
    beta = jnp.zeros((1, hidden_1), jnp.float32)   # bn1.bias
    return (w1, b1, gamma, beta, w2, b2)


def fcnet_reference(x, params):
    """Pure-JAX reference matching the torch module (train-mode BatchNorm)."""
    w1, b1, gamma, beta, w2, b2 = params
    h = x @ w1 + b1
    mean = jnp.mean(h, axis=0, keepdims=True)
    var = jnp.mean((h - mean) ** 2, axis=0, keepdims=True)
    h_bn = (h - mean) / jnp.sqrt(var + 1e-5) * gamma + beta
    hidden = jnp.maximum(h_bn, 0.0)
    o1 = hidden @ w2 + b2
    return jax.nn.sigmoid(o1), hidden


if __name__ == "__main__":
    key = jax.random.PRNGKey(0)
    kx, kp = jax.random.split(key)

    B, input_dim = 8, 21
    x = jax.random.normal(kx, (B, input_dim), jnp.float32)
    params = init_params(kp, input_dim=input_dim, hidden_1=200, hidden_2=200, op_dim=17)

    out2, hidden = fcnet_forward(x, params)
    out2 = jax.block_until_ready(out2)
    hidden = jax.block_until_ready(hidden)

    ref_out2, ref_hidden = fcnet_reference(x, params)
    assert out2.shape == (B, 17) and hidden.shape == (B, 200)
    # hidden path is exact-ish f32; sigmoid uses the approx EUP reciprocal.
    assert jnp.allclose(hidden, ref_hidden, atol=1e-4, rtol=1e-3)
    assert jnp.allclose(out2, ref_out2, atol=2e-3, rtol=2e-3)

    print("KERNEL_OK")
</pallas_src>

<mosaic_0001>
module attributes {stable_mosaic.version = 11 : i64} {
  func.func @kernel(%arg0: memref<8x128xf32, #tpu.memory_space<vmem>>, %arg1: memref<128x256xf32, #tpu.memory_space<vmem>>, %arg2: memref<1x256xf32, #tpu.memory_space<vmem>>, %arg3: memref<1x256xf32, #tpu.memory_space<vmem>>, %arg4: memref<256x128xf32, #tpu.memory_space<vmem>>, %arg5: memref<1x128xf32, #tpu.memory_space<vmem>>, %arg6: memref<8x128xf32, #tpu.memory_space<vmem>>, %arg7: memref<8x256xf32, #tpu.memory_space<vmem>>) attributes {dimension_semantics = [], scalar_prefetch = 0 : i64, scratch_operands = 0 : i64, tpu.core_type = #tpu.core_type<tc>} {
    %c0 = arith.constant 0 : index
    %c0_0 = arith.constant 0 : index
    %0 = vector.load %arg0[%c0, %c0_0] : memref<8x128xf32, #tpu.memory_space<vmem>>, vector<8x128xf32>
    %c0_1 = arith.constant 0 : index
    %c0_2 = arith.constant 0 : index
    %1 = vector.load %arg1[%c0_1, %c0_2] : memref<128x256xf32, #tpu.memory_space<vmem>>, vector<128x256xf32>
    %cst = arith.constant dense<0.000000e+00> : vector<8x256xf32>
    %2 = tpu.matmul %0, %1, %cst {dimension_numbers = #tpu.dot_dimension_numbers<[1], [0], [0], [1], [0, 0, 1, 1], [], []>} : vector<8x128xf32>, vector<128x256xf32>, vector<8x256xf32> -> vector<8x256xf32>
    %cst_3 = arith.constant dense<0.000000e+00> : vector<256xf32>
    %3 = vector.multi_reduction <add>, %2, %cst_3 [0] : vector<8x256xf32> to vector<256xf32>
    %4 = vector.shape_cast %3 : vector<256xf32> to vector<1x256xf32>
    %5 = arith.mulf %2, %2 : vector<8x256xf32>
    %cst_4 = arith.constant dense<0.000000e+00> : vector<256xf32>
    %6 = vector.multi_reduction <add>, %5, %cst_4 [0] : vector<8x256xf32> to vector<256xf32>
    %7 = vector.shape_cast %6 : vector<256xf32> to vector<1x256xf32>
    %cst_5 = arith.constant 1.250000e-01 : f32
    %8 = vector.broadcast %cst_5 : f32 to vector<1x256xf32>
    %9 = arith.mulf %4, %8 : vector<1x256xf32>
    %cst_6 = arith.constant 1.250000e-01 : f32
    %10 = vector.broadcast %cst_6 : f32 to vector<1x256xf32>
    %11 = arith.mulf %7, %10 : vector<1x256xf32>
    %12 = arith.mulf %9, %9 : vector<1x256xf32>
    %13 = arith.subf %11, %12 : vector<1x256xf32>
    %cst_7 = arith.constant 0.000000e+00 : f32
    %14 = vector.broadcast %cst_7 : f32 to vector<1x256xf32>
    %15 = arith.maximumf %13, %14 : vector<1x256xf32>
    %cst_8 = arith.constant 9.99999974E-6 : f32
    %16 = vector.broadcast %cst_8 : f32 to vector<1x256xf32>
    %17 = arith.addf %15, %16 : vector<1x256xf32>
    %18 = math.rsqrt %17 : vector<1x256xf32>
    %c0_9 = arith.constant 0 : index
    %c0_10 = arith.constant 0 : index
    %19 = vector.load %arg2[%c0_9, %c0_10] : memref<1x256xf32, #tpu.memory_space<vmem>>, vector<1x256xf32>
    %20 = arith.mulf %18, %19 : vector<1x256xf32>
    %21 = vector.broadcast %9 : vector<1x256xf32> to vector<8x256xf32>
    %22 = arith.subf %2, %21 : vector<8x256xf32>
    %23 = vector.broadcast %20 : vector<1x256xf32> to vector<8x256xf32>
    %24 = arith.mulf %22, %23 : vector<8x256xf32>
    %c0_11 = arith.constant 0 : index
    %c0_12 = arith.constant 0 : index
    %25 = vector.load %arg3[%c0_11, %c0_12] : memref<1x256xf32, #tpu.memory_space<vmem>>, vector<1x256xf32>
    %26 = vector.broadcast %25 : vector<1x256xf32> to vector<8x256xf32>
    %27 = arith.addf %24, %26 : vector<8x256xf32>
    %cst_13 = arith.constant 0.000000e+00 : f32
    %28 = vector.broadcast %cst_13 : f32 to vector<8x256xf32>
    %29 = arith.maximumf %27, %28 : vector<8x256xf32>
    %c0_14 = arith.constant 0 : index
    %c0_15 = arith.constant 0 : index
    %30 = vector.load %arg7[%c0_14, %c0_15] : memref<8x256xf32, #tpu.memory_space<vmem>>, vector<8x256xf32>
    tpu.vector_store %arg7[%c0_14, %c0_15], %29 {strides = array<i32>} : memref<8x256xf32, #tpu.memory_space<vmem>>, vector<8x256xf32>,
    %c0_16 = arith.constant 0 : index
    %c0_17 = arith.constant 0 : index
    %31 = vector.load %arg4[%c0_16, %c0_17] : memref<256x128xf32, #tpu.memory_space<vmem>>, vector<256x128xf32>
    %cst_18 = arith.constant dense<0.000000e+00> : vector<8x128xf32>
    %32 = tpu.matmul %29, %31, %cst_18 {dimension_numbers = #tpu.dot_dimension_numbers<[1], [0], [0], [1], [0, 0, 1, 1], [], []>} : vector<8x256xf32>, vector<256x128xf32>, vector<8x128xf32> -> vector<8x128xf32>
    %c0_19 = arith.constant 0 : index
    %c0_20 = arith.constant 0 : index
    %33 = vector.load %arg5[%c0_19, %c0_20] : memref<1x128xf32, #tpu.memory_space<vmem>>, vector<1x128xf32>
    %34 = vector.broadcast %33 : vector<1x128xf32> to vector<8x128xf32>
    %35 = arith.addf %32, %34 : vector<8x128xf32>
    %cst_21 = arith.constant 0.000000e+00 : f32
    %36 = vector.broadcast %cst_21 : f32 to vector<8x128xf32>
    %37 = arith.subf %36, %35 : vector<8x128xf32>
    %38 = math.exp %37 : vector<8x128xf32>
    %cst_22 = arith.constant 1.000000e+00 : f32
    %39 = vector.broadcast %cst_22 : f32 to vector<8x128xf32>
    %40 = arith.addf %39, %38 : vector<8x128xf32>
    %41 = tpu.reciprocal %40 {approx = true} : vector<8x128xf32> -> vector<8x128xf32>
    %c0_23 = arith.constant 0 : index
    %c0_24 = arith.constant 0 : index
    %42 = vector.load %arg6[%c0_23, %c0_24] : memref<8x128xf32, #tpu.memory_space<vmem>>, vector<8x128xf32>
    tpu.vector_store %arg6[%c0_23, %c0_24], %41 {strides = array<i32>} : memref<8x128xf32, #tpu.memory_space<vmem>>, vector<8x128xf32>,
    return
  }
}

</mosaic_0001>

<llo_original>
// kernel: fcnet_forward.1
$region0: #{fcnet_forward.1}
  #allocation0 [shape = 'u32[]', space=smem, size = 0x4, offset = 0x4, fixed_abs, tag = 'smem constant byte address 0x4 - core index']
  #allocation1 [shape = 'u32[72,128]{1,0:T(1,128)}', space=vmem, size = 0x9000, scoped, tag = 'internal scratch']
  %s0 = inlined_call_operand.vmem [shape: f32[8,128], index: 0, kind: input, shape index: {}]
  %s1 = inlined_call_operand.vmem [shape: f32[128,256], index: 1, kind: input, shape index: {}]
  %s2 = inlined_call_operand.vmem [shape: f32[1,256], index: 2, kind: input, shape index: {}]
  %s3 = inlined_call_operand.vmem [shape: f32[1,256], index: 3, kind: input, shape index: {}]
  %s4 = inlined_call_operand.vmem [shape: f32[256,128], index: 4, kind: input, shape index: {}]
  %s5 = inlined_call_operand.vmem [shape: f32[1,128], index: 5, kind: input, shape index: {}]
  %s6 = inlined_call_operand.hbm [shape: f32[8,128], index: 6, kind: output, shape index: {0}]
  %s7 = inlined_call_operand.hbm [shape: f32[8,256], index: 7, kind: output, shape index: {1}]
  %8 = xla_tuple %s6, %s7
  %s9 = sld [smem:[#allocation0]]
  $region42: #{fcnet_forward.1} parent=0
    _
  %s11 = ssub.s32 1, %s9
  %s12 = scalar_select 0, %s11, %s9
  $region1: #{fcnet_forward.1} parent=0
    #allocation2 [shape = 'u8[4096]{0}', space=vmem, size = 0x1000, scoped, tag = 'output window, operand 0, single buffered']
    #allocation3 [shape = 's32[1]{0}', space=sflag, size = 0x4, scoped, tag = 'scoped memory for fcnet_forward.1']
    #allocation4 [shape = 'u8[8192]{0}', space=vmem, size = 0x2000, scoped, tag = 'output window, operand 1, single buffered']
    #allocation5 [shape = 's32[1]{0}', space=sflag, size = 0x4, scoped, tag = 'scoped memory for fcnet_forward.1']
    %13 = vsyncpa [#allocation3], 0
    %14 = vsyncpa [#allocation5], 0
    // Predicated region
    $region2: #{fcnet_forward.1} parent=1 // pred_check
      _
    $region3: #{fcnet_forward.1} parent=1 // pred_check_branch
      %16 = sbr.rel (0) target = $region5
    $region4: #{fcnet_forward.1} parent=1 // pred_region
      _
    $region5: #{fcnet_forward.1} parent=1 // pred_fallthru
      _
    // Predicated region
    $region6: #{fcnet_forward.1} parent=1 // pred_check
      _
    $region7: #{fcnet_forward.1} parent=1 // pred_check_branch
      %18 = sbr.rel (0) target = $region9
    $region8: #{fcnet_forward.1} parent=1 // pred_region
      _
    $region9: #{fcnet_forward.1} parent=1 // pred_fallthru
      _
    // Predicated region
    $region10: #{fcnet_forward.1} parent=1 // pred_check
      _
    $region11: #{fcnet_forward.1} parent=1 // pred_check_branch
      %20 = sbr.rel (0) target = $region13
    $region12: #{fcnet_forward.1} parent=1 // pred_region
      _
    $region13: #{fcnet_forward.1} parent=1 // pred_fallthru
      _
    // Predicated region
    $region14: #{fcnet_forward.1} parent=1 // pred_check
      _
    $region15: #{fcnet_forward.1} parent=1 // pred_check_branch
      %22 = sbr.rel (0) target = $region17
    $region16: #{fcnet_forward.1} parent=1 // pred_region
      _
    $region17: #{fcnet_forward.1} parent=1 // pred_fallthru
      _
    // Predicated region
    $region18: #{fcnet_forward.1} parent=1 // pred_check
      _
    $region19: #{fcnet_forward.1} parent=1 // pred_check_branch
      %24 = sbr.rel (0) target = $region21
    $region20: #{fcnet_forward.1} parent=1 // pred_region
      _
    $region21: #{fcnet_forward.1} parent=1 // pred_fallthru
      _
    // Predicated region
    $region22: #{fcnet_forward.1} parent=1 // pred_check
      _
    $region23: #{fcnet_forward.1} parent=1 // pred_check_branch
      %26 = sbr.rel (0) target = $region25
    $region24: #{fcnet_forward.1} parent=1 // pred_region
      _
    $region25: #{fcnet_forward.1} parent=1 // pred_fallthru
      _
    %v27 = vld [vmem:[%s0] sm:$0xff]
    %v28 = vld [vmem:[%s1] sm:$0xff]
    %v29 = vld [vmem:[%s1 + $0x8] sm:$0xff]
    %v30 = vld [vmem:[%s1 + $0x10] sm:$0xff]
    %v31 = vld [vmem:[%s1 + $0x18] sm:$0xff]
    %v32 = vld [vmem:[%s1 + $0x20] sm:$0xff]
    %v33 = vld [vmem:[%s1 + $0x28] sm:$0xff]
    %v34 = vld [vmem:[%s1 + $0x30] sm:$0xff]
    %v35 = vld [vmem:[%s1 + $0x38] sm:$0xff]
    %v36 = vld [vmem:[%s1 + $0x40] sm:$0xff]
    %v37 = vld [vmem:[%s1 + $0x48] sm:$0xff]
    %v38 = vld [vmem:[%s1 + $0x50] sm:$0xff]
    %v39 = vld [vmem:[%s1 + $0x58] sm:$0xff]
    %v40 = vld [vmem:[%s1 + $0x60] sm:$0xff]
    %v41 = vld [vmem:[%s1 + $0x68] sm:$0xff]
    %v42 = vld [vmem:[%s1 + $0x70] sm:$0xff]
    %v43 = vld [vmem:[%s1 + $0x78] sm:$0xff]
    %v44 = vld [vmem:[%s1 + $0x80] sm:$0xff]
    %v45 = vld [vmem:[%s1 + $0x88] sm:$0xff]
    %v46 = vld [vmem:[%s1 + $0x90] sm:$0xff]
    %v47 = vld [vmem:[%s1 + $0x98] sm:$0xff]
    %v48 = vld [vmem:[%s1 + $0xa0] sm:$0xff]
    %v49 = vld [vmem:[%s1 + $0xa8] sm:$0xff]
    %v50 = vld [vmem:[%s1 + $0xb0] sm:$0xff]
    %v51 = vld [vmem:[%s1 + $0xb8] sm:$0xff]
    %v52 = vld [vmem:[%s1 + $0xc0] sm:$0xff]
    %v53 = vld [vmem:[%s1 + $0xc8] sm:$0xff]
    %v54 = vld [vmem:[%s1 + $0xd0] sm:$0xff]
    %v55 = vld [vmem:[%s1 + $0xd8] sm:$0xff]
    %v56 = vld [vmem:[%s1 + $0xe0] sm:$0xff]
    %v57 = vld [vmem:[%s1 + $0xe8] sm:$0xff]
    %v58 = vld [vmem:[%s1 + $0xf0] sm:$0xff]
    %v59 = vld [vmem:[%s1 + $0xf8] sm:$0xff]
    %60 = vmatpush.msra.mxu0 %v58
    %61 = vmatpush.msra.mxu0 %v56
    %62 = vmatpush.msra.mxu0 %v54
    %63 = vmatpush.msra.mxu0 %v52
    %64 = vmatpush.msra.mxu0 %v50
    %65 = vmatpush.msra.mxu0 %v48
    %66 = vmatpush.msra.mxu0 %v46
    %67 = vmatpush.msra.mxu0 %v44
    %68 = vmatpush.msra.mxu0 %v42
    %69 = vmatpush.msra.mxu0 %v40
    %70 = vmatpush.msra.mxu0 %v38
    %71 = vmatpush.msra.mxu0 %v36
    %72 = vmatpush.msra.mxu0 %v34
    %73 = vmatpush.msra.mxu0 %v32
    %74 = vmatpush.msra.mxu0 %v30
    %75 = vmatpush.msra.mxu0 %v28
    %76 = vmatmul.f32.gmra.mxu0 %v27
    %v77 = vpop.f32.mrf.mxu0
    %v78 = vadd.f32 0.0, %v77
    %79 = vdwg.mxu0
    %80 = vmatpush.msra.mxu0 %v59
    %81 = vmatpush.msra.mxu0 %v57
    %82 = vmatpush.msra.mxu0 %v55
    %83 = vmatpush.msra.mxu0 %v53
    %84 = vmatpush.msra.mxu0 %v51
    %85 = vmatpush.msra.mxu0 %v49
    %86 = vmatpush.msra.mxu0 %v47
    %87 = vmatpush.msra.mxu0 %v45
    %88 = vmatpush.msra.mxu0 %v43
    %89 = vmatpush.msra.mxu0 %v41
    %90 = vmatpush.msra.mxu0 %v39
    %91 = vmatpush.msra.mxu0 %v37
    %92 = vmatpush.msra.mxu0 %v35
    %93 = vmatpush.msra.mxu0 %v33
    %94 = vmatpush.msra.mxu0 %v31
    %95 = vmatpush.msra.mxu0 %v29
    %96 = vmatmul.f32.gmra.mxu0 %v27
    %v97 = vpop.f32.mrf.mxu0
    %v98 = vadd.f32 0.0, %v97
    %99 = vdwg.mxu0
    %v100 = vrot.slane %v78, 4
    %v101 = vadd.f32 %v78, %v100
    %v102 = vrot.slane %v101, 2
    %v103 = vadd.f32 %v101, %v102
    %v104 = vrot.slane %v103, 1
    %v105 = vadd.f32 %v103, %v104
    %v106 = vrot.slane %v98, 4
    %v107 = vadd.f32 %v98, %v106
    %v108 = vrot.slane %v107, 2
    %v109 = vadd.f32 %v107, %v108
    %v110 = vrot.slane %v109, 1
    %v111 = vadd.f32 %v109, %v110
    %v112 = vmul.f32 %v78, %v78
    %v113 = vmul.f32 %v98, %v98
    %v114 = vrot.slane %v112, 4
    %v115 = vadd.f32 %v112, %v114
    %v116 = vrot.slane %v115, 2
    %v117 = vadd.f32 %v115, %v116
    %v118 = vrot.slane %v117, 1
    %v119 = vadd.f32 %v117, %v118
    %v120 = vrot.slane %v113, 4
    %v121 = vadd.f32 %v113, %v120
    %v122 = vrot.slane %v121, 2
    %v123 = vadd.f32 %v121, %v122
    %v124 = vrot.slane %v123, 1
    %v125 = vadd.f32 %v123, %v124
    %v126 = vmul.f32 %v105, 0.125
    %v127 = vmul.f32 %v111, 0.125
    %v128 = vmul.f32 %v119, 0.125
    %v129 = vmul.f32 %v125, 0.125
    %v130 = vmul.f32 %v126, %v126
    %v131 = vmul.f32 %v127, %v127
    %v132 = vsub.f32 %v128, %v130
    %v133 = vsub.f32 %v129, %v131
    %v134 = vmax.f32 %v132, 0.0
    %v135 = vmax.f32 %v133, 0.0
    %v136 = vadd.f32 %v134, 1e-05
    %v137 = vadd.f32 %v135, 1e-05
    %v138 = vrsqrt.pop %v136
    %v139 = vmul.f32 %v138, %v136
    %v140 = vmul.f32 %v139, %v138
    %v141 = vmul.f32 0.5, %v140
    %v142 = vsub.f32 1.5, %v141
    %v143 = vmul.f32 %v138, %v142
    %vm144 = vweird.f32 %v136
    %vm145 = vweird.f32 %v138
    %vm146 = vmor %vm144, %vm145
    %v147 = vsel %vm146, %v138, %v143
    %v148 = vrsqrt.pop %v137
    %v149 = vmul.f32 %v148, %v137
    %v150 = vmul.f32 %v149, %v148
    %v151 = vmul.f32 0.5, %v150
    %v152 = vsub.f32 1.5, %v151
    %v153 = vmul.f32 %v148, %v152
    %vm154 = vweird.f32 %v137
    %vm155 = vweird.f32 %v148
    %vm156 = vmor %vm154, %vm155
    %v157 = vsel %vm156, %v148, %v153
    %v158 = vld [vmem:[%s2] sm:$0x3]
    %v160 = vperm.slane %v158, 0
    %v161 = vperm.slane %v158, 1
    %v164 = vmul.f32 %v147, %v160
    %v165 = vmul.f32 %v157, %v161
    %v166 = vsub.f32 %v78, %v126
    %v167 = vsub.f32 %v98, %v127
    %v168 = vperm.slane %v164, 0
    %v169 = vperm.slane %v165, 0
    %v170 = vmul.f32 %v166, %v168
    %v171 = vmul.f32 %v167, %v169
    %v172 = vld [vmem:[%s3] sm:$0x3]
    %v174 = vperm.slane %v172, 0
    %v175 = vperm.slane %v172, 1
    %v178 = vadd.f32 %v170, %v174
    %v179 = vadd.f32 %v171, %v175
    %v180 = vmax.f32 %v178, 0.0
    %v181 = vmax.f32 %v179, 0.0
    %182 = vst [vmem:[#allocation4] sm:$0xff] %v180
    %183 = vst [vmem:[#allocation4 + $0x8] sm:$0xff] %v181
    %v184 = vld [vmem:[%s4] sm:$0xff]
    %v185 = vld [vmem:[%s4 + $0x8] sm:$0xff]
    %v186 = vld [vmem:[%s4 + $0x10] sm:$0xff]
    %v187 = vld [vmem:[%s4 + $0x18] sm:$0xff]
    %v188 = vld [vmem:[%s4 + $0x20] sm:$0xff]
    %v189 = vld [vmem:[%s4 + $0x28] sm:$0xff]
    %v190 = vld [vmem:[%s4 + $0x30] sm:$0xff]
    %v191 = vld [vmem:[%s4 + $0x38] sm:$0xff]
    %v192 = vld [vmem:[%s4 + $0x40] sm:$0xff]
    %v193 = vld [vmem:[%s4 + $0x48] sm:$0xff]
    %v194 = vld [vmem:[%s4 + $0x50] sm:$0xff]
    %v195 = vld [vmem:[%s4 + $0x58] sm:$0xff]
    %v196 = vld [vmem:[%s4 + $0x60] sm:$0xff]
    %v197 = vld [vmem:[%s4 + $0x68] sm:$0xff]
    %v198 = vld [vmem:[%s4 + $0x70] sm:$0xff]
    %v199 = vld [vmem:[%s4 + $0x78] sm:$0xff]
    %v200 = vld [vmem:[%s4 + $0x80] sm:$0xff]
    %v201 = vld [vmem:[%s4 + $0x88] sm:$0xff]
    %v202 = vld [vmem:[%s4 + $0x90] sm:$0xff]
    %v203 = vld [vmem:[%s4 + $0x98] sm:$0xff]
    %v204 = vld [vmem:[%s4 + $0xa0] sm:$0xff]
    %v205 = vld [vmem:[%s4 + $0xa8] sm:$0xff]
    %v206 = vld [vmem:[%s4 + $0xb0] sm:$0xff]
    %v207 = vld [vmem:[%s4 + $0xb8] sm:$0xff]
    %v208 = vld [vmem:[%s4 + $0xc0] sm:$0xff]
    %v209 = vld [vmem:[%s4 + $0xc8] sm:$0xff]
    %v210 = vld [vmem:[%s4 + $0xd0] sm:$0xff]
    %v211 = vld [vmem:[%s4 + $0xd8] sm:$0xff]
    %v212 = vld [vmem:[%s4 + $0xe0] sm:$0xff]
    %v213 = vld [vmem:[%s4 + $0xe8] sm:$0xff]
    %v214 = vld [vmem:[%s4 + $0xf0] sm:$0xff]
    %v215 = vld [vmem:[%s4 + $0xf8] sm:$0xff]
    %v216 = vld [vmem:[%s5] sm:$0x1]
    %v218 = vperm.slane %v216, 0
    %220 = vmatpush.msra.mxu0 %v199
    %221 = vmatpush.msra.mxu0 %v198
    %222 = vmatpush.msra.mxu0 %v197
    %223 = vmatpush.msra.mxu0 %v196
    %224 = vmatpush.msra.mxu0 %v195
    %225 = vmatpush.msra.mxu0 %v194
    %226 = vmatpush.msra.mxu0 %v193
    %227 = vmatpush.msra.mxu0 %v192
    %228 = vmatpush.msra.mxu0 %v191
    %229 = vmatpush.msra.mxu0 %v190
    %230 = vmatpush.msra.mxu0 %v189
    %231 = vmatpush.msra.mxu0 %v188
    %232 = vmatpush.msra.mxu0 %v187
    %233 = vmatpush.msra.mxu0 %v186
    %234 = vmatpush.msra.mxu0 %v185
    %235 = vmatpush.msra.mxu0 %v184
    %236 = vmatmul.f32.gmra.mxu0 %v180
    %v237 = vpop.f32.mrf.mxu0
    %v238 = vadd.f32 %v218, %v237
    %239 = vdwg.mxu0
    %240 = vmatpush.msra.mxu0 %v215
    %241 = vmatpush.msra.mxu0 %v214
    %242 = vmatpush.msra.mxu0 %v213
    %243 = vmatpush.msra.mxu0 %v212
    %244 = vmatpush.msra.mxu0 %v211
    %245 = vmatpush.msra.mxu0 %v210
    %246 = vmatpush.msra.mxu0 %v209
    %247 = vmatpush.msra.mxu0 %v208
    %248 = vmatpush.msra.mxu0 %v207
    %249 = vmatpush.msra.mxu0 %v206
    %250 = vmatpush.msra.mxu0 %v205
    %251 = vmatpush.msra.mxu0 %v204
    %252 = vmatpush.msra.mxu0 %v203
    %253 = vmatpush.msra.mxu0 %v202
    %254 = vmatpush.msra.mxu0 %v201
    %255 = vmatpush.msra.mxu0 %v200
    %256 = vmatmul.f32.gmra.mxu0 %v181
    %v257 = vpop.f32.mrf.mxu0
    %v258 = vadd.f32 %v238, %v257
    %259 = vdwg.mxu0
    %v260 = vsub.f32 0.0, %v258
    %v261 = vmul.f32 %v260, 1.442695
    %v262 = vpow.pop %v261
    %v263 = vadd.f32 %v262, 1.0
    %v264 = vrcp.pop %v263
    %265 = vst [vmem:[#allocation2] sm:$0xff] %v264
    // Predicated region
    $region26: #{fcnet_forward.1} parent=1 // pred_check
      _
    $region27: #{fcnet_forward.1} parent=1 // pred_check_branch
      %267 = sbr.rel (0) target = $region29
    $region28: #{fcnet_forward.1} parent=1 // pred_region
      %269 = vsyncadd [#allocation3], 0
      %s271 = sshll.u32 [#allocation2], 4
      %s272 = int_to_ptr.vmem [resolvable:$true] %s271
      %s273 = sshll.u32 %s6, 4
      %s274 = int_to_ptr.hbm [resolvable:$true] %s273
      %276 = dma.vmem_to_hbm [thread:$0]  %s272, 128, %s274, [#allocation3]
    $region29: #{fcnet_forward.1} parent=1 // pred_fallthru
      _
    // Predicated region
    $region30: #{fcnet_forward.1} parent=1 // pred_check
      _
    $region31: #{fcnet_forward.1} parent=1 // pred_check_branch
      %278 = sbr.rel (0) target = $region33
    $region32: #{fcnet_forward.1} parent=1 // pred_region
      %280 = vsyncadd [#allocation5], 0
      %s282 = sshll.u32 [#allocation4], 4
      %s283 = int_to_ptr.vmem [resolvable:$true] %s282
      %s284 = sshll.u32 %s7, 4
      %s285 = int_to_ptr.hbm [resolvable:$true] %s284
      %287 = dma.vmem_to_hbm [thread:$0]  %s283, 256, %s285, [#allocation5]
    $region33: #{fcnet_forward.1} parent=1 // pred_fallthru
      _
    // Predicated region
    $region34: #{fcnet_forward.1} parent=1 // pred_check
      _
    $region35: #{fcnet_forward.1} parent=1 // pred_check_branch
      %289 = sbr.rel (0) target = $region37
    $region36: #{fcnet_forward.1} parent=1 // pred_region
      %291 = dma.done [#allocation3], 128
    $region37: #{fcnet_forward.1} parent=1 // pred_fallthru
      _
    // Predicated region
    $region38: #{fcnet_forward.1} parent=1 // pred_check
      _
    $region39: #{fcnet_forward.1} parent=1 // pred_check_branch
      %293 = sbr.rel (0) target = $region41
    $region40: #{fcnet_forward.1} parent=1 // pred_region
      %295 = dma.done [#allocation5], 256
    $region41: #{fcnet_forward.1} parent=1 // pred_fallthru
      _
    %296 = vsyncpa [#allocation3], 1
    %297 = vsyncpa [#allocation5], 1

</llo_original>
